<compile_context>
chip_gen: v5e
topology: v5e:2x2
jax: 0.10.0
libtpu: 0.0.40
codegen_flags: <defaults>
</compile_context>

<pallas_src>
from math import sqrt

import jax
import jax.numpy as jnp
from jax.experimental import pallas as pl
from jax.experimental.pallas import tpu as pltpu


# ----------------------------------------------------------------------------
# helpers
# ----------------------------------------------------------------------------
def _pick_tile(dim: int, pref: int) -> int:
    """Preferred (MXU-aligned) tile if it divides the dim, else the full dim.

    Full-dim blocks always satisfy the (8,128) BlockSpec rule; the preferred
    tiles used below (multiples of 256) satisfy it when they divide the dim.
    """
    if dim % pref == 0:
        return pref
    return dim


def _activation(name):
    if name is None or name in ("None", "null"):
        return None
    if name == "silu":
        return jax.nn.silu
    if name == "gelu":
        # tanh approximation avoids erf in-kernel
        return lambda x: jax.nn.gelu(x, approximate=True)
    if name == "mish":
        return lambda x: x * jnp.tanh(jax.nn.softplus(x))
    if name == "ssp":  # shifted softplus
        return lambda x: jax.nn.softplus(x) - jnp.log(2.0).astype(x.dtype)
    if name == "tanh":
        return jnp.tanh
    raise ValueError(f"Unknown nonlinearity: {name}")


_VMEM_LIMIT_BYTES = 40 * 1024 * 1024  # safe on v7x's 64 MiB with headroom


# ----------------------------------------------------------------------------
# 1) ScalarLinearLayer: tiled (M, N, K) matmul with f32 accumulator
# ----------------------------------------------------------------------------
def _make_linear_kernel(alpha: float, has_bias: bool):
    if has_bias:
        def kernel(x_ref, w_ref, b_ref, o_ref, acc_ref):
            kk = pl.program_id(2)

            @pl.when(kk == 0)
            def _():
                acc_ref[...] = jnp.zeros_like(acc_ref)

            acc_ref[...] += jnp.dot(
                x_ref[...], w_ref[...], preferred_element_type=jnp.float32
            )

            @pl.when(kk == pl.num_programs(2) - 1)
            def _():
                o_ref[...] = (acc_ref[...] * alpha + b_ref[...]).astype(o_ref.dtype)

        return kernel

    def kernel(x_ref, w_ref, o_ref, acc_ref):
        kk = pl.program_id(2)

        @pl.when(kk == 0)
        def _():
            acc_ref[...] = jnp.zeros_like(acc_ref)

        acc_ref[...] += jnp.dot(
            x_ref[...], w_ref[...], preferred_element_type=jnp.float32
        )

        @pl.when(kk == pl.num_programs(2) - 1)
        def _():
            o_ref[...] = (acc_ref[...] * alpha).astype(o_ref.dtype)

    return kernel


def scalar_linear(x, weight, alpha, bias=None, *, tm=256, tn=256, tk=256):
    """Pallas implementation of ScalarLinearLayer.forward: (x @ w)*alpha [+ b]."""
    n, k = x.shape
    k2, m = weight.shape
    assert k == k2
    alpha = float(alpha)
    has_bias = bias is not None

    tile_m = _pick_tile(n, tm)
    tile_n = _pick_tile(m, tn)
    tile_k = _pick_tile(k, tk)
    grid = (n // tile_m, m // tile_n, k // tile_k)

    in_specs = [
        pl.BlockSpec((tile_m, tile_k), lambda i, j, kk: (i, kk)),
        pl.BlockSpec((tile_k, tile_n), lambda i, j, kk: (kk, j)),
    ]
    args = [x, weight]
    if has_bias:
        in_specs.append(pl.BlockSpec((1, tile_n), lambda i, j, kk: (0, j)))
        args.append(bias.reshape(1, m).astype(jnp.float32))

    return pl.pallas_call(
        _make_linear_kernel(alpha, has_bias),
        out_shape=jax.ShapeDtypeStruct((n, m), x.dtype),
        grid_spec=pltpu.PrefetchScalarGridSpec(
            num_scalar_prefetch=0,
            grid=grid,
            in_specs=in_specs,
            out_specs=pl.BlockSpec((tile_m, tile_n), lambda i, j, kk: (i, j)),
            scratch_shapes=[pltpu.VMEM((tile_m, tile_n), jnp.float32)],
        ),
        compiler_params=pltpu.CompilerParams(
            dimension_semantics=("parallel", "parallel", "arbitrary"),
            vmem_limit_bytes=_VMEM_LIMIT_BYTES,
        ),
    )(*args)


# ----------------------------------------------------------------------------
# 2) ScalarMLPFunction: whole MLP fused into one kernel, tiled over rows
# ----------------------------------------------------------------------------
def _make_fused_mlp_kernel(alphas, has_bias, apply_act, act_fn):
    num_layers = len(alphas)

    def kernel(*refs):
        x_ref = refs[0]
        w_refs = refs[1 : 1 + num_layers]
        if has_bias:
            b_refs = refs[1 + num_layers : 1 + 2 * num_layers]
            o_ref = refs[1 + 2 * num_layers]
        else:
            b_refs = (None,) * num_layers
            o_ref = refs[1 + num_layers]

        h = x_ref[...].astype(jnp.float32)
        for l in range(num_layers):
            # MXU matmul in f32; alpha applied on the accumulator (not weight).
            h = jnp.dot(h, w_refs[l][...], preferred_element_type=jnp.float32)
            h = h * alphas[l]
            if has_bias:
                h = h + b_refs[l][...]
            if apply_act[l]:
                h = act_fn(h)
        o_ref[...] = h.astype(o_ref.dtype)

    return kernel


def scalar_mlp(x, weights, alphas, biases=None, nonlinearity="silu", *, tm=256):
    """Fused Pallas implementation of ScalarMLPFunction.forward.

    weights[l] has shape (dims[l], dims[l+1]); the nonlinearity is applied
    after every layer except the last (matching the torch module).
    """
    n, d_in = x.shape
    num_layers = len(weights)
    dims = [d_in] + [w.shape[1] for w in weights]
    for l in range(num_layers):
        assert weights[l].shape[0] == dims[l]
    has_bias = biases is not None
    act_fn = _activation(nonlinearity)
    apply_act = tuple(
        (act_fn is not None) and (l != num_layers - 1) for l in range(num_layers)
    )
    alphas = tuple(float(a) for a in alphas)

    tile_m = _pick_tile(n, tm)
    grid = (n // tile_m,)

    in_specs = [pl.BlockSpec((tile_m, d_in), lambda i: (i, 0))]
    args = [x]
    for l in range(num_layers):
        # Weights are small and block-index-constant -> stay resident in VMEM.
        in_specs.append(pl.BlockSpec((dims[l], dims[l + 1]), lambda i: (0, 0)))
        args.append(weights[l])
    if has_bias:
        for l in range(num_layers):
            in_specs.append(pl.BlockSpec((1, dims[l + 1]), lambda i: (0, 0)))
            args.append(biases[l].reshape(1, dims[l + 1]).astype(jnp.float32))

    kernel = _make_fused_mlp_kernel(
        alphas, has_bias, apply_act, act_fn if act_fn is not None else (lambda x: x)
    )

    return pl.pallas_call(
        kernel,
        out_shape=jax.ShapeDtypeStruct((n, dims[-1]), x.dtype),
        grid_spec=pltpu.PrefetchScalarGridSpec(
            num_scalar_prefetch=0,
            grid=grid,
            in_specs=in_specs,
            out_specs=pl.BlockSpec((tile_m, dims[-1]), lambda i: (i, 0)),
        ),
        compiler_params=pltpu.CompilerParams(
            dimension_semantics=("parallel",),
            vmem_limit_bytes=_VMEM_LIMIT_BYTES,
        ),
    )(*args)


# ----------------------------------------------------------------------------
# demo / correctness check
# ----------------------------------------------------------------------------
if __name__ == "__main__":
    key = jax.random.PRNGKey(0)
    keys = jax.random.split(key, 8)

    # --- Fused ScalarMLPFunction:
    #     input_dim=32, hidden_layers_depth=1, hidden_layers_width=64,
    #     output_dim=16, nonlinearity='silu', bias=False (module defaults),
    #     forward_weight_init=True, init_mode='uniform'.
    N = 512
    dims = [32, 64, 16]
    num_layers = len(dims) - 1
    alphas = []
    for layer, h_in in enumerate(dims[:-1]):
        gain = 1.0 if layer == 0 else sqrt(2.0)  # silu nonlinearity present
        alphas.append(gain / sqrt(h_in))

    x = jax.random.normal(keys[0], (N, dims[0]), dtype=jnp.float32)
    weights = [
        jax.random.uniform(
            keys[1 + l], (dims[l], dims[l + 1]), dtype=jnp.float32,
            minval=-sqrt(3.0), maxval=sqrt(3.0),
        )
        for l in range(num_layers)
    ]

    out_mlp = scalar_mlp(x, weights, alphas, biases=None, nonlinearity="silu")
    out_mlp = jax.block_until_ready(out_mlp)

    # Pure-JAX reference (same semantics as the torch Sequential of
    # ScalarLinearLayer + SiLU).
    ref = x
    for l in range(num_layers):
        ref = (ref @ weights[l]) * alphas[l]
        if l != num_layers - 1:
            ref = jax.nn.silu(ref)
    assert out_mlp.shape == (N, dims[-1])
    assert jnp.allclose(out_mlp, ref, rtol=1e-3, atol=1e-4), float(
        jnp.max(jnp.abs(out_mlp - ref))
    )

    # --- Standalone tiled ScalarLinearLayer (lane-dense, with bias, K reduction
    #     split across grid steps: grid = (1, 1, 2)).
    N2, K2, M2 = 256, 512, 256
    ALPHA2 = 1.0 / sqrt(K2)
    x2 = jax.random.normal(keys[4], (N2, K2), dtype=jnp.float32)
    w2 = jax.random.uniform(
        keys[5], (K2, M2), dtype=jnp.float32, minval=-sqrt(3.0), maxval=sqrt(3.0)
    )
    b2 = jax.random.normal(keys[6], (M2,), dtype=jnp.float32)

    out_lin = scalar_linear(x2, w2, ALPHA2, b2)
    out_lin = jax.block_until_ready(out_lin)

    ref_lin = x2 @ (w2 * ALPHA2) + b2
    assert out_lin.shape == (N2, M2)
    assert jnp.allclose(out_lin, ref_lin, rtol=1e-3, atol=1e-4), float(
        jnp.max(jnp.abs(out_lin - ref_lin))
    )

    # Also exercise the no-bias path (torch.mm branch).
    out_lin_nb = jax.block_until_ready(scalar_linear(x2, w2, ALPHA2, None))
    assert jnp.allclose(out_lin_nb, x2 @ (w2 * ALPHA2), rtol=1e-3, atol=1e-4)

    print("KERNEL_OK")
</pallas_src>

<mosaic_0001>
module attributes {stable_mosaic.version = 11 : i64} {
  func.func @kernel(%arg0: i32, %arg1: memref<256x32xf32, #tpu.memory_space<vmem>>, %arg2: memref<32x64xf32, #tpu.memory_space<vmem>>, %arg3: memref<64x16xf32, #tpu.memory_space<vmem>>, %arg4: memref<256x16xf32, #tpu.memory_space<vmem>>) attributes {dimension_semantics = [#tpu.dimension_semantics<parallel>], iteration_bounds = array<i64: 2>, scalar_prefetch = 0 : i64, scratch_operands = 0 : i64, tpu.core_type = #tpu.core_type<tc>, window_params = [{transform_indices = @transform_0, window_bounds = array<i64: 256, 32>}, {pipeline_mode = #tpu.pipeline_mode<synchronous>, transform_indices = @transform_1, window_bounds = array<i64: 32, 64>}, {pipeline_mode = #tpu.pipeline_mode<synchronous>, transform_indices = @transform_2, window_bounds = array<i64: 64, 16>}, {transform_indices = @transform_3, window_bounds = array<i64: 256, 16>}]} {
    %c0 = arith.constant 0 : index
    %c0_0 = arith.constant 0 : index
    %0 = vector.load %arg1[%c0, %c0_0] : memref<256x32xf32, #tpu.memory_space<vmem>>, vector<256x32xf32>
    %c0_1 = arith.constant 0 : index
    %c0_2 = arith.constant 0 : index
    %1 = vector.load %arg2[%c0_1, %c0_2] : memref<32x64xf32, #tpu.memory_space<vmem>>, vector<32x64xf32>
    %cst = arith.constant dense<0.000000e+00> : vector<256x64xf32>
    %2 = tpu.matmul %0, %1, %cst {dimension_numbers = #tpu.dot_dimension_numbers<[1], [0], [0], [1], [0, 0, 1, 1], [], []>} : vector<256x32xf32>, vector<32x64xf32>, vector<256x64xf32> -> vector<256x64xf32>
    %cst_3 = arith.constant 0.176776692 : f32
    %3 = vector.broadcast %cst_3 : f32 to vector<256x64xf32>
    %4 = arith.mulf %2, %3 : vector<256x64xf32>
    %5 = arith.negf %4 : vector<256x64xf32>
    %6 = math.exp %5 : vector<256x64xf32>
    %cst_4 = arith.constant 1.000000e+00 : f32
    %7 = vector.broadcast %cst_4 : f32 to vector<256x64xf32>
    %8 = arith.addf %7, %6 : vector<256x64xf32>
    %9 = arith.divf %7, %8 : vector<256x64xf32>
    %10 = arith.mulf %4, %9 : vector<256x64xf32>
    %c0_5 = arith.constant 0 : index
    %c0_6 = arith.constant 0 : index
    %11 = vector.load %arg3[%c0_5, %c0_6] : memref<64x16xf32, #tpu.memory_space<vmem>>, vector<64x16xf32>
    %cst_7 = arith.constant dense<0.000000e+00> : vector<256x16xf32>
    %12 = tpu.matmul %10, %11, %cst_7 {dimension_numbers = #tpu.dot_dimension_numbers<[1], [0], [0], [1], [0, 0, 1, 1], [], []>} : vector<256x64xf32>, vector<64x16xf32>, vector<256x16xf32> -> vector<256x16xf32>
    %cst_8 = arith.constant 0.176776692 : f32
    %13 = vector.broadcast %cst_8 : f32 to vector<256x16xf32>
    %14 = arith.mulf %12, %13 : vector<256x16xf32>
    %c0_9 = arith.constant 0 : index
    %c0_10 = arith.constant 0 : index
    %15 = vector.load %arg4[%c0_9, %c0_10] : memref<256x16xf32, #tpu.memory_space<vmem>>, vector<256x16xf32>
    tpu.vector_store %arg4[%c0_9, %c0_10], %14 {strides = array<i32>} : memref<256x16xf32, #tpu.memory_space<vmem>>, vector<256x16xf32>,
    return
  }
  func.func @transform_0(%arg0: i32) -> (i32, i32) {
    %c0_i32 = arith.constant 0 : i32
    %c0_i32_0 = arith.constant 0 : i32
    return %arg0, %c0_i32 : i32, i32
  }
  func.func @transform_1(%arg0: i32) -> (i32, i32) {
    %c0_i32 = arith.constant 0 : i32
    %c0_i32_0 = arith.constant 0 : i32
    %c0_i32_1 = arith.constant 0 : i32
    return %c0_i32, %c0_i32_0 : i32, i32
  }
  func.func @transform_2(%arg0: i32) -> (i32, i32) {
    %c0_i32 = arith.constant 0 : i32
    %c0_i32_0 = arith.constant 0 : i32
    %c0_i32_1 = arith.constant 0 : i32
    return %c0_i32, %c0_i32_0 : i32, i32
  }
  func.func @transform_3(%arg0: i32) -> (i32, i32) {
    %c0_i32 = arith.constant 0 : i32
    %c0_i32_0 = arith.constant 0 : i32
    return %arg0, %c0_i32 : i32, i32
  }
}

</mosaic_0001>

<llo_original>
// kernel: tpu_custom_call.1
$region0: #{tpu_custom_call.1}
  #allocation0 [shape = 'u32[]', space=smem, size = 0x4, offset = 0x4, fixed_abs, tag = 'smem constant byte address 0x4 - core index']
  #allocation1 [shape = 'u32[72,128]{1,0:T(1,128)}', space=vmem, size = 0x9000, scoped, tag = 'internal scratch']
  %s0 = inlined_call_operand.vmem [shape: f32[512,32], index: 0, kind: input, shape index: {}]
  %s1 = inlined_call_operand.vmem [shape: f32[32,64], index: 1, kind: input, shape index: {}]
  %s2 = inlined_call_operand.vmem [shape: f32[64,16], index: 2, kind: input, shape index: {}]
  %s3 = inlined_call_operand.vmem [shape: f32[512,16], index: 3, kind: output, shape index: {}]
  %s4 = sld [smem:[#allocation0]]
  $region45: #{tpu_custom_call.1} parent=0
    _
  %s6 = ssub.s32 1, %s4
  %s7 = scalar_select 0, %s6, %s4
  loop: start=0, step=1, limit=4
  $region2: #{tpu_custom_call.1} parent=0 // loop_pre_header
    _
  $region3: #{tpu_custom_call.1} parent=0 // loop_header
    %s9 = sphi 0, %s13
    %p10 = scmp.ge.s32.totalorder %s9, 4
    %s19 = sphi 0, %s21
    %s22 = sphi 0, %s19
    %s23 = sphi 0, %s22
    %s39 = sphi 0, %s23
    %s43 = sphi 0, %s43
    %s45 = sphi 0, %s43
    %s46 = sphi 0, %s45
    %s60 = sphi 0, %s46
    %s64 = sphi 0, %s64
    %s66 = sphi 0, %s64
    %s67 = sphi 0, %s66
    %s81 = sphi 0, %s67
    %s87 = sphi 0, %s89
    %s90 = sphi 0, %s87
    %s91 = sphi 0, %s90
    %s107 = sphi 0, %s91
  $region4: #{tpu_custom_call.1} parent=0 // loop_header_branch
    %12 = sbr.rel (%p10) target = $region8
  $region5: #{tpu_custom_call.1} parent=0 // loop_body
    %s14 = ssub.s32 %s9, 1
    %s15 = ssub.s32 %s9, 2
    %s16 = sadd.s32 %s9, 1
    %s17 = ssub.s32 %s9, %s16
    %p18 = scmp.eq.s32.totalorder %s17, 0
    %s20 = sadd.s32 %s19, 1
    %s21 = scalar_select %p18, %s19, %s20
    %p24 = pneg %p18
    %p25 = scmp.eq.s32.totalorder %s9, 1
    %p26 = por %p24, %p25
    %p27 = scmp.ne.s32.totalorder %s19, %s22
    %p28 = scmp.eq.s32.totalorder %s9, 0
    %p29 = por %p27, %p28
    %p30 = scmp.ne.s32.totalorder %s19, %s22
    %p31 = scmp.eq.s32.totalorder %s14, 1
    %p32 = por %p30, %p31
    %p33 = scmp.ne.s32.totalorder %s22, %s23
    %p34 = scmp.eq.s32.totalorder %s14, 0
    %p35 = por %p33, %p34
    %p36 = scmp.ne.s32.totalorder %s22, %s23
    %p37 = scmp.eq.s32.totalorder %s15, 1
    %p38 = por %p36, %p37
    %p40 = scmp.ne.s32.totalorder %s23, %s39
    %p41 = scmp.eq.s32.totalorder %s15, 0
    %p42 = por %p40, %p41
    %s44 = sadd.s32 %s43, 1
    %p47 = scmp.eq.s32.totalorder %s9, 1
    %p48 = scmp.ne.s32.totalorder %s43, %s45
    %p49 = scmp.eq.s32.totalorder %s9, 0
    %p50 = por %p48, %p49
    %p51 = scmp.ne.s32.totalorder %s43, %s45
    %p52 = scmp.eq.s32.totalorder %s14, 1
    %p53 = por %p51, %p52
    %p54 = scmp.ne.s32.totalorder %s45, %s46
    %p55 = scmp.eq.s32.totalorder %s14, 0
    %p56 = por %p54, %p55
    %p57 = scmp.ne.s32.totalorder %s45, %s46
    %p58 = scmp.eq.s32.totalorder %s15, 1
    %p59 = por %p57, %p58
    %p61 = scmp.ne.s32.totalorder %s46, %s60
    %p62 = scmp.eq.s32.totalorder %s15, 0
    %p63 = por %p61, %p62
    %s65 = sadd.s32 %s64, 1
    %p68 = scmp.eq.s32.totalorder %s9, 1
    %p69 = scmp.ne.s32.totalorder %s64, %s66
    %p70 = scmp.eq.s32.totalorder %s9, 0
    %p71 = por %p69, %p70
    %p72 = scmp.ne.s32.totalorder %s64, %s66
    %p73 = scmp.eq.s32.totalorder %s14, 1
    %p74 = por %p72, %p73
    %p75 = scmp.ne.s32.totalorder %s66, %s67
    %p76 = scmp.eq.s32.totalorder %s14, 0
    %p77 = por %p75, %p76
    %p78 = scmp.ne.s32.totalorder %s66, %s67
    %p79 = scmp.eq.s32.totalorder %s15, 1
    %p80 = por %p78, %p79
    %p82 = scmp.ne.s32.totalorder %s67, %s81
    %p83 = scmp.eq.s32.totalorder %s15, 0
    %p84 = por %p82, %p83
    %s85 = ssub.s32 %s9, %s16
    %p86 = scmp.eq.s32.totalorder %s85, 0
    %s88 = sadd.s32 %s87, 1
    %s89 = scalar_select %p86, %s87, %s88
    %p92 = pneg %p86
    %p93 = scmp.eq.s32.totalorder %s9, 1
    %p94 = por %p92, %p93
    %p95 = scmp.ne.s32.totalorder %s87, %s90
    %p96 = scmp.eq.s32.totalorder %s9, 0
    %p97 = por %p95, %p96
    %p98 = scmp.ne.s32.totalorder %s87, %s90
    %p99 = scmp.eq.s32.totalorder %s14, 1
    %p100 = por %p98, %p99
    %p101 = scmp.ne.s32.totalorder %s90, %s91
    %p102 = scmp.eq.s32.totalorder %s14, 0
    %p103 = por %p101, %p102
    %p104 = scmp.ne.s32.totalorder %s90, %s91
    %p105 = scmp.eq.s32.totalorder %s15, 1
    %p106 = por %p104, %p105
    %p108 = scmp.ne.s32.totalorder %s91, %s107
    %p109 = scmp.eq.s32.totalorder %s15, 0
    %p110 = por %p108, %p109
    %p111 = scmp.le.s32.totalorder 1, %s9
    %p112 = scmp.lt.s32.totalorder %s9, 3
    %p113 = pnand %p111, %p112
    %p114 = pneg %p113
    // Predicated region
    $region9: #{tpu_custom_call.1} parent=5 // pred_check
      _
    $region10: #{tpu_custom_call.1} parent=5 // pred_check_branch
      %116 = sbr.rel (%p113) target = $region12
    $region11: #{tpu_custom_call.1} parent=5 // pred_region
      %s117 = ssub.s32 %s9, 1
      // Predicated region
      $region13: #{tpu_custom_call.1} parent=11 // pred_check
        %p118 = pneg %p56
      $region14: #{tpu_custom_call.1} parent=11 // pred_check_branch
        %120 = sbr.rel (%p118) target = $region16
      $region15: #{tpu_custom_call.1} parent=11 // pred_region
        _
      $region16: #{tpu_custom_call.1} parent=11 // pred_fallthru
        _
      // Predicated region
      $region17: #{tpu_custom_call.1} parent=11 // pred_check
        %p121 = pneg %p77
      $region18: #{tpu_custom_call.1} parent=11 // pred_check_branch
        %123 = sbr.rel (%p121) target = $region20
      $region19: #{tpu_custom_call.1} parent=11 // pred_region
        _
      $region20: #{tpu_custom_call.1} parent=11 // pred_fallthru
        _
    $region12: #{tpu_custom_call.1} parent=5 // pred_fallthru
      _
    %p124 = scmp.lt.s32.totalorder %s9, 2
    // Predicated region
    $region21: #{tpu_custom_call.1} parent=5 // pred_check
      %p125 = pneg %p124
    $region22: #{tpu_custom_call.1} parent=5 // pred_check_branch
      %127 = sbr.rel (%p125) target = $region24
    $region23: #{tpu_custom_call.1} parent=5 // pred_region
      // Predicated region
      $region25: #{tpu_custom_call.1} parent=23 // pred_check
        %p128 = pneg %p29
      $region26: #{tpu_custom_call.1} parent=23 // pred_check_branch
        %130 = sbr.rel (%p128) target = $region28
      $region27: #{tpu_custom_call.1} parent=23 // pred_region
        %s131 = smul.u32 32, %s9
        %p132 = scmp.lt.s32.totalorder %s131, 63
        %s133 = scalar_select %p132, %s131, 63
        %s134 = smul.addr %s133, 8
        %s135 = scalar_lea.vmem %s0, %s134
        %s136 = smul.u32 32, %s9
      $region28: #{tpu_custom_call.1} parent=23 // pred_fallthru
        _
    $region24: #{tpu_custom_call.1} parent=5 // pred_fallthru
      _
    %p137 = scmp.le.s32.totalorder 1, %s9
    %p138 = scmp.lt.s32.totalorder %s9, 3
    %p139 = pnand %p137, %p138
    %p140 = pneg %p139
    // Predicated region
    $region29: #{tpu_custom_call.1} parent=5 // pred_check
      _
    $region30: #{tpu_custom_call.1} parent=5 // pred_check_branch
      %142 = sbr.rel (%p139) target = $region32
    $region31: #{tpu_custom_call.1} parent=5 // pred_region
      %s143 = ssub.s32 %s9, 1
      %s144 = smul.u32 32, %s14
      %p145 = scmp.lt.s32.totalorder %s144, 63
      %s146 = scalar_select %p145, %s144, 63
      %s147 = smul.addr %s146, 8
      %s148 = scalar_lea.vmem %s0, %s147
      %p149 = pneg %p35
      %p150 = pneg %p32
      %p151 = pneg %p56
      %p152 = pneg %p53
      %p153 = pneg %p77
      %p154 = pneg %p74
      %p155 = pneg %p103
      %p156 = pneg %p100
      %s157 = smul.u32 32, %s14
      %p158 = scmp.lt.s32.totalorder %s157, 63
      %s159 = scalar_select %p158, %s157, 63
      %s160 = smul.addr %s159, 8
      %s161 = scalar_lea.vmem %s3, %s160
      %s162 = smul.u32 32, %s14
      %p163 = scmp.lt.s32.totalorder %s162, 63
      %s164 = scalar_select %p163, %s162, 63
      %s165 = smul.addr %s164, 8
      %s166 = scalar_lea.vmem %s0, %s165
      %s167 = smul.u32 32, %s14
      %s168 = smul.u32 32, %s14
      %p169 = scmp.lt.s32.totalorder %s168, 63
      %s170 = scalar_select %p169, %s168, 63
      %s171 = smul.addr %s170, 8
      %s172 = scalar_lea.vmem %s3, %s171
      %s173 = smul.u32 32, %s14
      %v174 = vld [vmem:[%s166] sm:$0xff]
      %v175 = vld [vmem:[%s166 + $0x8] sm:$0xff]
      %v176 = vld [vmem:[%s166 + $0x10] sm:$0xff]
      %v177 = vld [vmem:[%s166 + $0x18] sm:$0xff]
      %v178 = vld [vmem:[%s166 + $0x20] sm:$0xff]
      %v179 = vld [vmem:[%s166 + $0x28] sm:$0xff]
      %v180 = vld [vmem:[%s166 + $0x30] sm:$0xff]
      %v181 = vld [vmem:[%s166 + $0x38] sm:$0xff]
      %v182 = vld [vmem:[%s166 + $0x40] sm:$0xff]
      %v183 = vld [vmem:[%s166 + $0x48] sm:$0xff]
      %v184 = vld [vmem:[%s166 + $0x50] sm:$0xff]
      %v185 = vld [vmem:[%s166 + $0x58] sm:$0xff]
      %v186 = vld [vmem:[%s166 + $0x60] sm:$0xff]
      %v187 = vld [vmem:[%s166 + $0x68] sm:$0xff]
      %v188 = vld [vmem:[%s166 + $0x70] sm:$0xff]
      %v189 = vld [vmem:[%s166 + $0x78] sm:$0xff]
      %v190 = vld [vmem:[%s166 + $0x80] sm:$0xff]
      %v191 = vld [vmem:[%s166 + $0x88] sm:$0xff]
      %v192 = vld [vmem:[%s166 + $0x90] sm:$0xff]
      %v193 = vld [vmem:[%s166 + $0x98] sm:$0xff]
      %v194 = vld [vmem:[%s166 + $0xa0] sm:$0xff]
      %v195 = vld [vmem:[%s166 + $0xa8] sm:$0xff]
      %v196 = vld [vmem:[%s166 + $0xb0] sm:$0xff]
      %v197 = vld [vmem:[%s166 + $0xb8] sm:$0xff]
      %v198 = vld [vmem:[%s166 + $0xc0] sm:$0xff]
      %v199 = vld [vmem:[%s166 + $0xc8] sm:$0xff]
      %v200 = vld [vmem:[%s166 + $0xd0] sm:$0xff]
      %v201 = vld [vmem:[%s166 + $0xd8] sm:$0xff]
      %v202 = vld [vmem:[%s166 + $0xe0] sm:$0xff]
      %v203 = vld [vmem:[%s166 + $0xe8] sm:$0xff]
      %v204 = vld [vmem:[%s166 + $0xf0] sm:$0xff]
      %v205 = vld [vmem:[%s166 + $0xf8] sm:$0xff]
      %v206 = vld [vmem:[%s1] sm:$0xff]
      %v207 = vld [vmem:[%s1 + $0x8] sm:$0xff]
      %v208 = vld [vmem:[%s1 + $0x10] sm:$0xff]
      %v209 = vld [vmem:[%s1 + $0x18] sm:$0xff]
      %vm210 = vcmask 261120
      %v212 = vsel %vm210, %v174, 0
      %v215 = vsel %vm210, %v175, 0
      %v218 = vsel %vm210, %v176, 0
      %v221 = vsel %vm210, %v177, 0
      %v224 = vsel %vm210, %v178, 0
      %v227 = vsel %vm210, %v179, 0
      %v230 = vsel %vm210, %v180, 0
      %v233 = vsel %vm210, %v181, 0
      %v236 = vsel %vm210, %v182, 0
      %v239 = vsel %vm210, %v183, 0
      %v242 = vsel %vm210, %v184, 0
      %v245 = vsel %vm210, %v185, 0
      %v248 = vsel %vm210, %v186, 0
      %v251 = vsel %vm210, %v187, 0
      %v254 = vsel %vm210, %v188, 0
      %v257 = vsel %vm210, %v189, 0
      %v260 = vsel %vm210, %v190, 0
      %v263 = vsel %vm210, %v191, 0
      %v266 = vsel %vm210, %v192, 0
      %v269 = vsel %vm210, %v193, 0
      %v272 = vsel %vm210, %v194, 0
      %v275 = vsel %vm210, %v195, 0
      %v278 = vsel %vm210, %v196, 0
      %v281 = vsel %vm210, %v197, 0
      %v284 = vsel %vm210, %v198, 0
      %v287 = vsel %vm210, %v199, 0
      %v290 = vsel %vm210, %v200, 0
      %v293 = vsel %vm210, %v201, 0
      %v296 = vsel %vm210, %v202, 0
      %v299 = vsel %vm210, %v203, 0
      %v302 = vsel %vm210, %v204, 0
      %v305 = vsel %vm210, %v205, 0
      %307 = vmatpush.msra.mxu0 0.0
      %308 = vmatpush.msra.mxu0 0.0
      %309 = vmatpush.msra.mxu0 0.0
      %310 = vmatpush.msra.mxu0 0.0
      %311 = vmatpush.msra.mxu0 0.0
      %312 = vmatpush.msra.mxu0 0.0
      %313 = vmatpush.msra.mxu0 0.0
      %314 = vmatpush.msra.mxu0 0.0
      %315 = vmatpush.msra.mxu0 0.0
      %316 = vmatpush.msra.mxu0 0.0
      %317 = vmatpush.msra.mxu0 0.0
      %318 = vmatpush.msra.mxu0 0.0
      %319 = vmatpush.msra.mxu0 %v209
      %320 = vmatpush.msra.mxu0 %v208
      %321 = vmatpush.msra.mxu0 %v207
      %322 = vmatpush.msra.mxu0 %v206
      %323 = vmatmul.f32.gmra.mxu0 %v212
      %v324 = vpop.f32.mrf.mxu0
      %v325 = vadd.f32 0.0, %v324
      %326 = vmatmul.f32.gmra.mxu0 %v215
      %v327 = vpop.f32.mrf.mxu0
      %v328 = vadd.f32 0.0, %v327
      %329 = vmatmul.f32.gmra.mxu0 %v218
      %v330 = vpop.f32.mrf.mxu0
      %v331 = vadd.f32 0.0, %v330
      %332 = vmatmul.f32.gmra.mxu0 %v221
      %v333 = vpop.f32.mrf.mxu0
      %v334 = vadd.f32 0.0, %v333
      %335 = vmatmul.f32.gmra.mxu0 %v224
      %v336 = vpop.f32.mrf.mxu0
      %v337 = vadd.f32 0.0, %v336
      %338 = vmatmul.f32.gmra.mxu0 %v227
      %v339 = vpop.f32.mrf.mxu0
      %v340 = vadd.f32 0.0, %v339
      %341 = vmatmul.f32.gmra.mxu0 %v230
      %v342 = vpop.f32.mrf.mxu0
      %v343 = vadd.f32 0.0, %v342
      %344 = vmatmul.f32.gmra.mxu0 %v233
      %v345 = vpop.f32.mrf.mxu0
      %v346 = vadd.f32 0.0, %v345
      %347 = vmatmul.f32.gmra.mxu0 %v236
      %v348 = vpop.f32.mrf.mxu0
      %v349 = vadd.f32 0.0, %v348
      %350 = vmatmul.f32.gmra.mxu0 %v239
      %v351 = vpop.f32.mrf.mxu0
      %v352 = vadd.f32 0.0, %v351
      %353 = vmatmul.f32.gmra.mxu0 %v242
      %v354 = vpop.f32.mrf.mxu0
      %v355 = vadd.f32 0.0, %v354
      %356 = vmatmul.f32.gmra.mxu0 %v245
      %v357 = vpop.f32.mrf.mxu0
      %v358 = vadd.f32 0.0, %v357
      %359 = vmatmul.f32.gmra.mxu0 %v248
      %v360 = vpop.f32.mrf.mxu0
      %v361 = vadd.f32 0.0, %v360
      %362 = vmatmul.f32.gmra.mxu0 %v251
      %v363 = vpop.f32.mrf.mxu0
      %v364 = vadd.f32 0.0, %v363
      %365 = vmatmul.f32.gmra.mxu0 %v254
      %v366 = vpop.f32.mrf.mxu0
      %v367 = vadd.f32 0.0, %v366
      %368 = vmatmul.f32.gmra.mxu0 %v257
      %v369 = vpop.f32.mrf.mxu0
      %v370 = vadd.f32 0.0, %v369
      %371 = vmatmul.f32.gmra.mxu0 %v260
      %v372 = vpop.f32.mrf.mxu0
      %v373 = vadd.f32 0.0, %v372
      %374 = vmatmul.f32.gmra.mxu0 %v263
      %v375 = vpop.f32.mrf.mxu0
      %v376 = vadd.f32 0.0, %v375
      %377 = vmatmul.f32.gmra.mxu0 %v266
      %v378 = vpop.f32.mrf.mxu0
      %v379 = vadd.f32 0.0, %v378
      %380 = vmatmul.f32.gmra.mxu0 %v269
      %v381 = vpop.f32.mrf.mxu0
      %v382 = vadd.f32 0.0, %v381
      %383 = vmatmul.f32.gmra.mxu0 %v272
      %v384 = vpop.f32.mrf.mxu0
      %v385 = vadd.f32 0.0, %v384
      %386 = vmatmul.f32.gmra.mxu0 %v275
      %v387 = vpop.f32.mrf.mxu0
      %v388 = vadd.f32 0.0, %v387
      %389 = vmatmul.f32.gmra.mxu0 %v278
      %v390 = vpop.f32.mrf.mxu0
      %v391 = vadd.f32 0.0, %v390
      %392 = vmatmul.f32.gmra.mxu0 %v281
      %v393 = vpop.f32.mrf.mxu0
      %v394 = vadd.f32 0.0, %v393
      %395 = vmatmul.f32.gmra.mxu0 %v284
      %v396 = vpop.f32.mrf.mxu0
      %v397 = vadd.f32 0.0, %v396
      %398 = vmatmul.f32.gmra.mxu0 %v287
      %v399 = vpop.f32.mrf.mxu0
      %v400 = vadd.f32 0.0, %v399
      %401 = vmatmul.f32.gmra.mxu0 %v290
      %v402 = vpop.f32.mrf.mxu0
      %v403 = vadd.f32 0.0, %v402
      %404 = vmatmul.f32.gmra.mxu0 %v293
      %v405 = vpop.f32.mrf.mxu0
      %v406 = vadd.f32 0.0, %v405
      %407 = vmatmul.f32.gmra.mxu0 %v296
      %v408 = vpop.f32.mrf.mxu0
      %v409 = vadd.f32 0.0, %v408
      %410 = vmatmul.f32.gmra.mxu0 %v299
      %v411 = vpop.f32.mrf.mxu0
      %v412 = vadd.f32 0.0, %v411
      %413 = vmatmul.f32.gmra.mxu0 %v302
      %v414 = vpop.f32.mrf.mxu0
      %v415 = vadd.f32 0.0, %v414
      %416 = vmatmul.f32.gmra.mxu0 %v305
      %v417 = vpop.f32.mrf.mxu0
      %v418 = vadd.f32 0.0, %v417
      %419 = vdwg.mxu0
      %v420 = vmul.f32 %v325, 0.17677669
      %v421 = vmul.f32 %v328, 0.17677669
      %v422 = vmul.f32 %v331, 0.17677669
      %v423 = vmul.f32 %v334, 0.17677669
      %v424 = vmul.f32 %v337, 0.17677669
      %v425 = vmul.f32 %v340, 0.17677669
      %v426 = vmul.f32 %v343, 0.17677669
      %v427 = vmul.f32 %v346, 0.17677669
      %v428 = vmul.f32 %v349, 0.17677669
      %v429 = vmul.f32 %v352, 0.17677669
      %v430 = vmul.f32 %v355, 0.17677669
      %v431 = vmul.f32 %v358, 0.17677669
      %v432 = vmul.f32 %v361, 0.17677669
      %v433 = vmul.f32 %v364, 0.17677669
      %v434 = vmul.f32 %v367, 0.17677669
      %v435 = vmul.f32 %v370, 0.17677669
      %v436 = vmul.f32 %v373, 0.17677669
      %v437 = vmul.f32 %v376, 0.17677669
      %v438 = vmul.f32 %v379, 0.17677669
      %v439 = vmul.f32 %v382, 0.17677669
      %v440 = vmul.f32 %v385, 0.17677669
      %v441 = vmul.f32 %v388, 0.17677669
      %v442 = vmul.f32 %v391, 0.17677669
      %v443 = vmul.f32 %v394, 0.17677669
      %v444 = vmul.f32 %v397, 0.17677669
      %v445 = vmul.f32 %v400, 0.17677669
      %v446 = vmul.f32 %v403, 0.17677669
      %v447 = vmul.f32 %v406, 0.17677669
      %v448 = vmul.f32 %v409, 0.17677669
      %v449 = vmul.f32 %v412, 0.17677669
      %v450 = vmul.f32 %v415, 0.17677669
      %v451 = vmul.f32 %v418, 0.17677669
      %v452 = vxor.u32 %v420, 2147483648
      %v453 = vxor.u32 %v421, 2147483648
      %v454 = vxor.u32 %v422, 2147483648
      %v455 = vxor.u32 %v423, 2147483648
      %v456 = vxor.u32 %v424, 2147483648
      %v457 = vxor.u32 %v425, 2147483648
      %v458 = vxor.u32 %v426, 2147483648
      %v459 = vxor.u32 %v427, 2147483648
      %v460 = vxor.u32 %v428, 2147483648
      %v461 = vxor.u32 %v429, 2147483648
      %v462 = vxor.u32 %v430, 2147483648
      %v463 = vxor.u32 %v431, 2147483648
      %v464 = vxor.u32 %v432, 2147483648
      %v465 = vxor.u32 %v433, 2147483648
      %v466 = vxor.u32 %v434, 2147483648
      %v467 = vxor.u32 %v435, 2147483648
      %v468 = vxor.u32 %v436, 2147483648
      %v469 = vxor.u32 %v437, 2147483648
      %v470 = vxor.u32 %v438, 2147483648
      %v471 = vxor.u32 %v439, 2147483648
      %v472 = vxor.u32 %v440, 2147483648
      %v473 = vxor.u32 %v441, 2147483648
      %v474 = vxor.u32 %v442, 2147483648
      %v475 = vxor.u32 %v443, 2147483648
      %v476 = vxor.u32 %v444, 2147483648
      %v477 = vxor.u32 %v445, 2147483648
      %v478 = vxor.u32 %v446, 2147483648
      %v479 = vxor.u32 %v447, 2147483648
      %v480 = vxor.u32 %v448, 2147483648
      %v481 = vxor.u32 %v449, 2147483648
      %v482 = vxor.u32 %v450, 2147483648
      %v483 = vxor.u32 %v451, 2147483648
      %v484 = vmul.f32 %v452, 1.442695
      %v485 = vpow.pop %v484
      %v486 = vmul.f32 %v453, 1.442695
      %v487 = vpow.pop %v486
      %v488 = vmul.f32 %v454, 1.442695
      %v489 = vpow.pop %v488
      %v490 = vmul.f32 %v455, 1.442695
      %v491 = vpow.pop %v490
      %v492 = vmul.f32 %v456, 1.442695
      %v493 = vpow.pop %v492
      %v494 = vmul.f32 %v457, 1.442695
      %v495 = vpow.pop %v494
      %v496 = vmul.f32 %v458, 1.442695
      %v497 = vpow.pop %v496
      %v498 = vmul.f32 %v459, 1.442695
      %v499 = vpow.pop %v498
      %v500 = vmul.f32 %v460, 1.442695
      %v501 = vpow.pop %v500
      %v502 = vmul.f32 %v461, 1.442695
      %v503 = vpow.pop %v502
      %v504 = vmul.f32 %v462, 1.442695
      %v505 = vpow.pop %v504
      %v506 = vmul.f32 %v463, 1.442695
      %v507 = vpow.pop %v506
      %v508 = vmul.f32 %v464, 1.442695
      %v509 = vpow.pop %v508
      %v510 = vmul.f32 %v465, 1.442695
      %v511 = vpow.pop %v510
      %v512 = vmul.f32 %v466, 1.442695
      %v513 = vpow.pop %v512
      %v514 = vmul.f32 %v467, 1.442695
      %v515 = vpow.pop %v514
      %v516 = vmul.f32 %v468, 1.442695
      %v517 = vpow.pop %v516
      %v518 = vmul.f32 %v469, 1.442695
      %v519 = vpow.pop %v518
      %v520 = vmul.f32 %v470, 1.442695
      %v521 = vpow.pop %v520
      %v522 = vmul.f32 %v471, 1.442695
      %v523 = vpow.pop %v522
      %v524 = vmul.f32 %v472, 1.442695
      %v525 = vpow.pop %v524
      %v526 = vmul.f32 %v473, 1.442695
      %v527 = vpow.pop %v526
      %v528 = vmul.f32 %v474, 1.442695
      %v529 = vpow.pop %v528
      %v530 = vmul.f32 %v475, 1.442695
      %v531 = vpow.pop %v530
      %v532 = vmul.f32 %v476, 1.442695
      %v533 = vpow.pop %v532
      %v534 = vmul.f32 %v477, 1.442695
      %v535 = vpow.pop %v534
      %v536 = vmul.f32 %v478, 1.442695
      %v537 = vpow.pop %v536
      %v538 = vmul.f32 %v479, 1.442695
      %v539 = vpow.pop %v538
      %v540 = vmul.f32 %v480, 1.442695
      %v541 = vpow.pop %v540
      %v542 = vmul.f32 %v481, 1.442695
      %v543 = vpow.pop %v542
      %v544 = vmul.f32 %v482, 1.442695
      %v545 = vpow.pop %v544
      %v546 = vmul.f32 %v483, 1.442695
      %v547 = vpow.pop %v546
      %v548 = vadd.f32 %v485, 1.0
      %v549 = vadd.f32 %v487, 1.0
      %v550 = vadd.f32 %v489, 1.0
      %v551 = vadd.f32 %v491, 1.0
      %v552 = vadd.f32 %v493, 1.0
      %v553 = vadd.f32 %v495, 1.0
      %v554 = vadd.f32 %v497, 1.0
      %v555 = vadd.f32 %v499, 1.0
      %v556 = vadd.f32 %v501, 1.0
      %v557 = vadd.f32 %v503, 1.0
      %v558 = vadd.f32 %v505, 1.0
      %v559 = vadd.f32 %v507, 1.0
      %v560 = vadd.f32 %v509, 1.0
      %v561 = vadd.f32 %v511, 1.0
      %v562 = vadd.f32 %v513, 1.0
      %v563 = vadd.f32 %v515, 1.0
      %v564 = vadd.f32 %v517, 1.0
      %v565 = vadd.f32 %v519, 1.0
      %v566 = vadd.f32 %v521, 1.0
      %v567 = vadd.f32 %v523, 1.0
      %v568 = vadd.f32 %v525, 1.0
      %v569 = vadd.f32 %v527, 1.0
      %v570 = vadd.f32 %v529, 1.0
      %v571 = vadd.f32 %v531, 1.0
      %v572 = vadd.f32 %v533, 1.0
      %v573 = vadd.f32 %v535, 1.0
      %v574 = vadd.f32 %v537, 1.0
      %v575 = vadd.f32 %v539, 1.0
      %v576 = vadd.f32 %v541, 1.0
      %v577 = vadd.f32 %v543, 1.0
      %v578 = vadd.f32 %v545, 1.0
      %v579 = vadd.f32 %v547, 1.0
      %v580 = vrcp.pop %v548
      %v581 = vmul.f32 %v548, %v580
      %v582 = vsub.f32 1.0, %v581
      %v583 = vmul.f32 %v580, %v582
      %v584 = vadd.f32 %v580, %v583
      %vm585 = vweird.f32 %v548
      %vm586 = vweird.f32 %v580
      %vm587 = vmor %vm585, %vm586
      %v588 = vsel %vm587, %v580, %v584
      %v589 = vand.u32 2147483647, %v548
      %vm590 = vcmp.eq.f32.partialorder %v589, 8.507059e+37
      %v591 = vand.u32 %v548, 2147483648
      %v592 = vor.u32 1.1754944e-38, %v591
      %v593 = vsel %vm590, %v592, %v588
      %v594 = vmul.f32 1.0, %v593
      %v595 = vrcp.pop %v549
      %v596 = vmul.f32 %v549, %v595
      %v597 = vsub.f32 1.0, %v596
      %v598 = vmul.f32 %v595, %v597
      %v599 = vadd.f32 %v595, %v598
      %vm600 = vweird.f32 %v549
      %vm601 = vweird.f32 %v595
      %vm602 = vmor %vm600, %vm601
      %v603 = vsel %vm602, %v595, %v599
      %v604 = vand.u32 2147483647, %v549
      %vm605 = vcmp.eq.f32.partialorder %v604, 8.507059e+37
      %v606 = vand.u32 %v549, 2147483648
      %v607 = vor.u32 1.1754944e-38, %v606
      %v608 = vsel %vm605, %v607, %v603
      %v609 = vmul.f32 1.0, %v608
      %v610 = vrcp.pop %v550
      %v611 = vmul.f32 %v550, %v610
      %v612 = vsub.f32 1.0, %v611
      %v613 = vmul.f32 %v610, %v612
      %v614 = vadd.f32 %v610, %v613
      %vm615 = vweird.f32 %v550
      %vm616 = vweird.f32 %v610
      %vm617 = vmor %vm615, %vm616
      %v618 = vsel %vm617, %v610, %v614
      %v619 = vand.u32 2147483647, %v550
      %vm620 = vcmp.eq.f32.partialorder %v619, 8.507059e+37
      %v621 = vand.u32 %v550, 2147483648
      %v622 = vor.u32 1.1754944e-38, %v621
      %v623 = vsel %vm620, %v622, %v618
      %v624 = vmul.f32 1.0, %v623
      %v625 = vrcp.pop %v551
      %v626 = vmul.f32 %v551, %v625
      %v627 = vsub.f32 1.0, %v626
      %v628 = vmul.f32 %v625, %v627
      %v629 = vadd.f32 %v625, %v628
      %vm630 = vweird.f32 %v551
      %vm631 = vweird.f32 %v625
      %vm632 = vmor %vm630, %vm631
      %v633 = vsel %vm632, %v625, %v629
      %v634 = vand.u32 2147483647, %v551
      %vm635 = vcmp.eq.f32.partialorder %v634, 8.507059e+37
      %v636 = vand.u32 %v551, 2147483648
      %v637 = vor.u32 1.1754944e-38, %v636
      %v638 = vsel %vm635, %v637, %v633
      %v639 = vmul.f32 1.0, %v638
      %v640 = vrcp.pop %v552
      %v641 = vmul.f32 %v552, %v640
      %v642 = vsub.f32 1.0, %v641
      %v643 = vmul.f32 %v640, %v642
      %v644 = vadd.f32 %v640, %v643
      %vm645 = vweird.f32 %v552
      %vm646 = vweird.f32 %v640
      %vm647 = vmor %vm645, %vm646
      %v648 = vsel %vm647, %v640, %v644
      %v649 = vand.u32 2147483647, %v552
      %vm650 = vcmp.eq.f32.partialorder %v649, 8.507059e+37
      %v651 = vand.u32 %v552, 2147483648
      %v652 = vor.u32 1.1754944e-38, %v651
      %v653 = vsel %vm650, %v652, %v648
      %v654 = vmul.f32 1.0, %v653
      %v655 = vrcp.pop %v553
      %v656 = vmul.f32 %v553, %v655
      %v657 = vsub.f32 1.0, %v656
      %v658 = vmul.f32 %v655, %v657
      %v659 = vadd.f32 %v655, %v658
      %vm660 = vweird.f32 %v553
      %vm661 = vweird.f32 %v655
      %vm662 = vmor %vm660, %vm661
      %v663 = vsel %vm662, %v655, %v659
      %v664 = vand.u32 2147483647, %v553
      %vm665 = vcmp.eq.f32.partialorder %v664, 8.507059e+37
      %v666 = vand.u32 %v553, 2147483648
      %v667 = vor.u32 1.1754944e-38, %v666
      %v668 = vsel %vm665, %v667, %v663
      %v669 = vmul.f32 1.0, %v668
      %v670 = vrcp.pop %v554
      %v671 = vmul.f32 %v554, %v670
      %v672 = vsub.f32 1.0, %v671
      %v673 = vmul.f32 %v670, %v672
      %v674 = vadd.f32 %v670, %v673
      %vm675 = vweird.f32 %v554
      %vm676 = vweird.f32 %v670
      %vm677 = vmor %vm675, %vm676
      %v678 = vsel %vm677, %v670, %v674
      %v679 = vand.u32 2147483647, %v554
      %vm680 = vcmp.eq.f32.partialorder %v679, 8.507059e+37
      %v681 = vand.u32 %v554, 2147483648
      %v682 = vor.u32 1.1754944e-38, %v681
      %v683 = vsel %vm680, %v682, %v678
      %v684 = vmul.f32 1.0, %v683
      %v685 = vrcp.pop %v555
      %v686 = vmul.f32 %v555, %v685
      %v687 = vsub.f32 1.0, %v686
      %v688 = vmul.f32 %v685, %v687
      %v689 = vadd.f32 %v685, %v688
      %vm690 = vweird.f32 %v555
      %vm691 = vweird.f32 %v685
      %vm692 = vmor %vm690, %vm691
      %v693 = vsel %vm692, %v685, %v689
      %v694 = vand.u32 2147483647, %v555
      %vm695 = vcmp.eq.f32.partialorder %v694, 8.507059e+37
      %v696 = vand.u32 %v555, 2147483648
      %v697 = vor.u32 1.1754944e-38, %v696
      %v698 = vsel %vm695, %v697, %v693
      %v699 = vmul.f32 1.0, %v698
      %v700 = vrcp.pop %v556
      %v701 = vmul.f32 %v556, %v700
      %v702 = vsub.f32 1.0, %v701
      %v703 = vmul.f32 %v700, %v702
      %v704 = vadd.f32 %v700, %v703
      %vm705 = vweird.f32 %v556
      %vm706 = vweird.f32 %v700
      %vm707 = vmor %vm705, %vm706
      %v708 = vsel %vm707, %v700, %v704
      %v709 = vand.u32 2147483647, %v556
      %vm710 = vcmp.eq.f32.partialorder %v709, 8.507059e+37
      %v711 = vand.u32 %v556, 2147483648
      %v712 = vor.u32 1.1754944e-38, %v711
      %v713 = vsel %vm710, %v712, %v708
      %v714 = vmul.f32 1.0, %v713
      %v715 = vrcp.pop %v557
      %v716 = vmul.f32 %v557, %v715
      %v717 = vsub.f32 1.0, %v716
      %v718 = vmul.f32 %v715, %v717
      %v719 = vadd.f32 %v715, %v718
      %vm720 = vweird.f32 %v557
      %vm721 = vweird.f32 %v715
      %vm722 = vmor %vm720, %vm721
      %v723 = vsel %vm722, %v715, %v719
      %v724 = vand.u32 2147483647, %v557
      %vm725 = vcmp.eq.f32.partialorder %v724, 8.507059e+37
      %v726 = vand.u32 %v557, 2147483648
      %v727 = vor.u32 1.1754944e-38, %v726
      %v728 = vsel %vm725, %v727, %v723
      %v729 = vmul.f32 1.0, %v728
      %v730 = vrcp.pop %v558
      %v731 = vmul.f32 %v558, %v730
      %v732 = vsub.f32 1.0, %v731
      %v733 = vmul.f32 %v730, %v732
      %v734 = vadd.f32 %v730, %v733
      %vm735 = vweird.f32 %v558
      %vm736 = vweird.f32 %v730
      %vm737 = vmor %vm735, %vm736
      %v738 = vsel %vm737, %v730, %v734
      %v739 = vand.u32 2147483647, %v558
      %vm740 = vcmp.eq.f32.partialorder %v739, 8.507059e+37
      %v741 = vand.u32 %v558, 2147483648
      %v742 = vor.u32 1.1754944e-38, %v741
      %v743 = vsel %vm740, %v742, %v738
      %v744 = vmul.f32 1.0, %v743
      %v745 = vrcp.pop %v559
      %v746 = vmul.f32 %v559, %v745
      %v747 = vsub.f32 1.0, %v746
      %v748 = vmul.f32 %v745, %v747
      %v749 = vadd.f32 %v745, %v748
      %vm750 = vweird.f32 %v559
      %vm751 = vweird.f32 %v745
      %vm752 = vmor %vm750, %vm751
      %v753 = vsel %vm752, %v745, %v749
      %v754 = vand.u32 2147483647, %v559
      %vm755 = vcmp.eq.f32.partialorder %v754, 8.507059e+37
      %v756 = vand.u32 %v559, 2147483648
      %v757 = vor.u32 1.1754944e-38, %v756
      %v758 = vsel %vm755, %v757, %v753
      %v759 = vmul.f32 1.0, %v758
      %v760 = vrcp.pop %v560
      %v761 = vmul.f32 %v560, %v760
      %v762 = vsub.f32 1.0, %v761
      %v763 = vmul.f32 %v760, %v762
      %v764 = vadd.f32 %v760, %v763
      %vm765 = vweird.f32 %v560
      %vm766 = vweird.f32 %v760
      %vm767 = vmor %vm765, %vm766
      %v768 = vsel %vm767, %v760, %v764
      %v769 = vand.u32 2147483647, %v560
      %vm770 = vcmp.eq.f32.partialorder %v769, 8.507059e+37
      %v771 = vand.u32 %v560, 2147483648
      %v772 = vor.u32 1.1754944e-38, %v771
      %v773 = vsel %vm770, %v772, %v768
      %v774 = vmul.f32 1.0, %v773
      %v775 = vrcp.pop %v561
      %v776 = vmul.f32 %v561, %v775
      %v777 = vsub.f32 1.0, %v776
      %v778 = vmul.f32 %v775, %v777
      %v779 = vadd.f32 %v775, %v778
      %vm780 = vweird.f32 %v561
      %vm781 = vweird.f32 %v775
      %vm782 = vmor %vm780, %vm781
      %v783 = vsel %vm782, %v775, %v779
      %v784 = vand.u32 2147483647, %v561
      %vm785 = vcmp.eq.f32.partialorder %v784, 8.507059e+37
      %v786 = vand.u32 %v561, 2147483648
      %v787 = vor.u32 1.1754944e-38, %v786
      %v788 = vsel %vm785, %v787, %v783
      %v789 = vmul.f32 1.0, %v788
      %v790 = vrcp.pop %v562
      %v791 = vmul.f32 %v562, %v790
      %v792 = vsub.f32 1.0, %v791
      %v793 = vmul.f32 %v790, %v792
      %v794 = vadd.f32 %v790, %v793
      %vm795 = vweird.f32 %v562
      %vm796 = vweird.f32 %v790
      %vm797 = vmor %vm795, %vm796
      %v798 = vsel %vm797, %v790, %v794
      %v799 = vand.u32 2147483647, %v562
      %vm800 = vcmp.eq.f32.partialorder %v799, 8.507059e+37
      %v801 = vand.u32 %v562, 2147483648
      %v802 = vor.u32 1.1754944e-38, %v801
      %v803 = vsel %vm800, %v802, %v798
      %v804 = vmul.f32 1.0, %v803
      %v805 = vrcp.pop %v563
      %v806 = vmul.f32 %v563, %v805
      %v807 = vsub.f32 1.0, %v806
      %v808 = vmul.f32 %v805, %v807
      %v809 = vadd.f32 %v805, %v808
      %vm810 = vweird.f32 %v563
      %vm811 = vweird.f32 %v805
      %vm812 = vmor %vm810, %vm811
      %v813 = vsel %vm812, %v805, %v809
      %v814 = vand.u32 2147483647, %v563
      %vm815 = vcmp.eq.f32.partialorder %v814, 8.507059e+37
      %v816 = vand.u32 %v563, 2147483648
      %v817 = vor.u32 1.1754944e-38, %v816
      %v818 = vsel %vm815, %v817, %v813
      %v819 = vmul.f32 1.0, %v818
      %v820 = vrcp.pop %v564
      %v821 = vmul.f32 %v564, %v820
      %v822 = vsub.f32 1.0, %v821
      %v823 = vmul.f32 %v820, %v822
      %v824 = vadd.f32 %v820, %v823
      %vm825 = vweird.f32 %v564
      %vm826 = vweird.f32 %v820
      %vm827 = vmor %vm825, %vm826
      %v828 = vsel %vm827, %v820, %v824
      %v829 = vand.u32 2147483647, %v564
      %vm830 = vcmp.eq.f32.partialorder %v829, 8.507059e+37
      %v831 = vand.u32 %v564, 2147483648
      %v832 = vor.u32 1.1754944e-38, %v831
      %v833 = vsel %vm830, %v832, %v828
      %v834 = vmul.f32 1.0, %v833
      %v835 = vrcp.pop %v565
      %v836 = vmul.f32 %v565, %v835
      %v837 = vsub.f32 1.0, %v836
      %v838 = vmul.f32 %v835, %v837
      %v839 = vadd.f32 %v835, %v838
      %vm840 = vweird.f32 %v565
      %vm841 = vweird.f32 %v835
      %vm842 = vmor %vm840, %vm841
      %v843 = vsel %vm842, %v835, %v839
      %v844 = vand.u32 2147483647, %v565
      %vm845 = vcmp.eq.f32.partialorder %v844, 8.507059e+37
      %v846 = vand.u32 %v565, 2147483648
      %v847 = vor.u32 1.1754944e-38, %v846
      %v848 = vsel %vm845, %v847, %v843
      %v849 = vmul.f32 1.0, %v848
      %v850 = vrcp.pop %v566
      %v851 = vmul.f32 %v566, %v850
      %v852 = vsub.f32 1.0, %v851
      %v853 = vmul.f32 %v850, %v852
      %v854 = vadd.f32 %v850, %v853
      %vm855 = vweird.f32 %v566
      %vm856 = vweird.f32 %v850
      %vm857 = vmor %vm855, %vm856
      %v858 = vsel %vm857, %v850, %v854
      %v859 = vand.u32 2147483647, %v566
      %vm860 = vcmp.eq.f32.partialorder %v859, 8.507059e+37
      %v861 = vand.u32 %v566, 2147483648
      %v862 = vor.u32 1.1754944e-38, %v861
      %v863 = vsel %vm860, %v862, %v858
      %v864 = vmul.f32 1.0, %v863
      %v865 = vrcp.pop %v567
      %v866 = vmul.f32 %v567, %v865
      %v867 = vsub.f32 1.0, %v866
      %v868 = vmul.f32 %v865, %v867
      %v869 = vadd.f32 %v865, %v868
      %vm870 = vweird.f32 %v567
      %vm871 = vweird.f32 %v865
      %vm872 = vmor %vm870, %vm871
      %v873 = vsel %vm872, %v865, %v869
      %v874 = vand.u32 2147483647, %v567
      %vm875 = vcmp.eq.f32.partialorder %v874, 8.507059e+37
      %v876 = vand.u32 %v567, 2147483648
      %v877 = vor.u32 1.1754944e-38, %v876
      %v878 = vsel %vm875, %v877, %v873
      %v879 = vmul.f32 1.0, %v878
      %v880 = vrcp.pop %v568
      %v881 = vmul.f32 %v568, %v880
      %v882 = vsub.f32 1.0, %v881
      %v883 = vmul.f32 %v880, %v882
      %v884 = vadd.f32 %v880, %v883
      %vm885 = vweird.f32 %v568
      %vm886 = vweird.f32 %v880
      %vm887 = vmor %vm885, %vm886
      %v888 = vsel %vm887, %v880, %v884
      %v889 = vand.u32 2147483647, %v568
      %vm890 = vcmp.eq.f32.partialorder %v889, 8.507059e+37
      %v891 = vand.u32 %v568, 2147483648
      %v892 = vor.u32 1.1754944e-38, %v891
      %v893 = vsel %vm890, %v892, %v888
      %v894 = vmul.f32 1.0, %v893
      %v895 = vrcp.pop %v569
      %v896 = vmul.f32 %v569, %v895
      %v897 = vsub.f32 1.0, %v896
      %v898 = vmul.f32 %v895, %v897
      %v899 = vadd.f32 %v895, %v898
      %vm900 = vweird.f32 %v569
      %vm901 = vweird.f32 %v895
      %vm902 = vmor %vm900, %vm901
      %v903 = vsel %vm902, %v895, %v899
      %v904 = vand.u32 2147483647, %v569
      %vm905 = vcmp.eq.f32.partialorder %v904, 8.507059e+37
      %v906 = vand.u32 %v569, 2147483648
      %v907 = vor.u32 1.1754944e-38, %v906
      %v908 = vsel %vm905, %v907, %v903
      %v909 = vmul.f32 1.0, %v908
      %v910 = vrcp.pop %v570
      %v911 = vmul.f32 %v570, %v910
      %v912 = vsub.f32 1.0, %v911
      %v913 = vmul.f32 %v910, %v912
      %v914 = vadd.f32 %v910, %v913
      %vm915 = vweird.f32 %v570
      %vm916 = vweird.f32 %v910
      %vm917 = vmor %vm915, %vm916
      %v918 = vsel %vm917, %v910, %v914
      %v919 = vand.u32 2147483647, %v570
      %vm920 = vcmp.eq.f32.partialorder %v919, 8.507059e+37
      %v921 = vand.u32 %v570, 2147483648
      %v922 = vor.u32 1.1754944e-38, %v921
      %v923 = vsel %vm920, %v922, %v918
      %v924 = vmul.f32 1.0, %v923
      %v925 = vrcp.pop %v571
      %v926 = vmul.f32 %v571, %v925
      %v927 = vsub.f32 1.0, %v926
      %v928 = vmul.f32 %v925, %v927
      %v929 = vadd.f32 %v925, %v928
      %vm930 = vweird.f32 %v571
      %vm931 = vweird.f32 %v925
      %vm932 = vmor %vm930, %vm931
      %v933 = vsel %vm932, %v925, %v929
      %v934 = vand.u32 2147483647, %v571
      %vm935 = vcmp.eq.f32.partialorder %v934, 8.507059e+37
      %v936 = vand.u32 %v571, 2147483648
      %v937 = vor.u32 1.1754944e-38, %v936
      %v938 = vsel %vm935, %v937, %v933
      %v939 = vmul.f32 1.0, %v938
      %v940 = vrcp.pop %v572
      %v941 = vmul.f32 %v572, %v940
      %v942 = vsub.f32 1.0, %v941
      %v943 = vmul.f32 %v940, %v942
      %v944 = vadd.f32 %v940, %v943
      %vm945 = vweird.f32 %v572
      %vm946 = vweird.f32 %v940
      %vm947 = vmor %vm945, %vm946
      %v948 = vsel %vm947, %v940, %v944
      %v949 = vand.u32 2147483647, %v572
      %vm950 = vcmp.eq.f32.partialorder %v949, 8.507059e+37
      %v951 = vand.u32 %v572, 2147483648
      %v952 = vor.u32 1.1754944e-38, %v951
      %v953 = vsel %vm950, %v952, %v948
      %v954 = vmul.f32 1.0, %v953
      %v955 = vrcp.pop %v573
      %v956 = vmul.f32 %v573, %v955
      %v957 = vsub.f32 1.0, %v956
      %v958 = vmul.f32 %v955, %v957
      %v959 = vadd.f32 %v955, %v958
      %vm960 = vweird.f32 %v573
      %vm961 = vweird.f32 %v955
      %vm962 = vmor %vm960, %vm961
      %v963 = vsel %vm962, %v955, %v959
      %v964 = vand.u32 2147483647, %v573
      %vm965 = vcmp.eq.f32.partialorder %v964, 8.507059e+37
      %v966 = vand.u32 %v573, 2147483648
      %v967 = vor.u32 1.1754944e-38, %v966
      %v968 = vsel %vm965, %v967, %v963
      %v969 = vmul.f32 1.0, %v968
      %v970 = vrcp.pop %v574
      %v971 = vmul.f32 %v574, %v970
      %v972 = vsub.f32 1.0, %v971
      %v973 = vmul.f32 %v970, %v972
      %v974 = vadd.f32 %v970, %v973
      %vm975 = vweird.f32 %v574
      %vm976 = vweird.f32 %v970
      %vm977 = vmor %vm975, %vm976
      %v978 = vsel %vm977, %v970, %v974
      %v979 = vand.u32 2147483647, %v574
      %vm980 = vcmp.eq.f32.partialorder %v979, 8.507059e+37
      %v981 = vand.u32 %v574, 2147483648
      %v982 = vor.u32 1.1754944e-38, %v981
      %v983 = vsel %vm980, %v982, %v978
      %v984 = vmul.f32 1.0, %v983
      %v985 = vrcp.pop %v575
      %v986 = vmul.f32 %v575, %v985
      %v987 = vsub.f32 1.0, %v986
      %v988 = vmul.f32 %v985, %v987
      %v989 = vadd.f32 %v985, %v988
      %vm990 = vweird.f32 %v575
      %vm991 = vweird.f32 %v985
      %vm992 = vmor %vm990, %vm991
      %v993 = vsel %vm992, %v985, %v989
      %v994 = vand.u32 2147483647, %v575
      %vm995 = vcmp.eq.f32.partialorder %v994, 8.507059e+37
      %v996 = vand.u32 %v575, 2147483648
      %v997 = vor.u32 1.1754944e-38, %v996
      %v998 = vsel %vm995, %v997, %v993
      %v999 = vmul.f32 1.0, %v998
      %v1000 = vrcp.pop %v576
      %v1001 = vmul.f32 %v576, %v1000
      %v1002 = vsub.f32 1.0, %v1001
      %v1003 = vmul.f32 %v1000, %v1002
      %v1004 = vadd.f32 %v1000, %v1003
      %vm1005 = vweird.f32 %v576
      %vm1006 = vweird.f32 %v1000
      %vm1007 = vmor %vm1005, %vm1006
      %v1008 = vsel %vm1007, %v1000, %v1004
      %v1009 = vand.u32 2147483647, %v576
      %vm1010 = vcmp.eq.f32.partialorder %v1009, 8.507059e+37
      %v1011 = vand.u32 %v576, 2147483648
      %v1012 = vor.u32 1.1754944e-38, %v1011
      %v1013 = vsel %vm1010, %v1012, %v1008
      %v1014 = vmul.f32 1.0, %v1013
      %v1015 = vrcp.pop %v577
      %v1016 = vmul.f32 %v577, %v1015
      %v1017 = vsub.f32 1.0, %v1016
      %v1018 = vmul.f32 %v1015, %v1017
      %v1019 = vadd.f32 %v1015, %v1018
      %vm1020 = vweird.f32 %v577
      %vm1021 = vweird.f32 %v1015
      %vm1022 = vmor %vm1020, %vm1021
      %v1023 = vsel %vm1022, %v1015, %v1019
      %v1024 = vand.u32 2147483647, %v577
      %vm1025 = vcmp.eq.f32.partialorder %v1024, 8.507059e+37
      %v1026 = vand.u32 %v577, 2147483648
      %v1027 = vor.u32 1.1754944e-38, %v1026
      %v1028 = vsel %vm1025, %v1027, %v1023
      %v1029 = vmul.f32 1.0, %v1028
      %v1030 = vrcp.pop %v578
      %v1031 = vmul.f32 %v578, %v1030
      %v1032 = vsub.f32 1.0, %v1031
      %v1033 = vmul.f32 %v1030, %v1032
      %v1034 = vadd.f32 %v1030, %v1033
      %vm1035 = vweird.f32 %v578
      %vm1036 = vweird.f32 %v1030
      %vm1037 = vmor %vm1035, %vm1036
      %v1038 = vsel %vm1037, %v1030, %v1034
      %v1039 = vand.u32 2147483647, %v578
      %vm1040 = vcmp.eq.f32.partialorder %v1039, 8.507059e+37
      %v1041 = vand.u32 %v578, 2147483648
      %v1042 = vor.u32 1.1754944e-38, %v1041
      %v1043 = vsel %vm1040, %v1042, %v1038
      %v1044 = vmul.f32 1.0, %v1043
      %v1045 = vrcp.pop %v579
      %v1046 = vmul.f32 %v579, %v1045
      %v1047 = vsub.f32 1.0, %v1046
      %v1048 = vmul.f32 %v1045, %v1047
      %v1049 = vadd.f32 %v1045, %v1048
      %vm1050 = vweird.f32 %v579
      %vm1051 = vweird.f32 %v1045
      %vm1052 = vmor %vm1050, %vm1051
      %v1053 = vsel %vm1052, %v1045, %v1049
      %v1054 = vand.u32 2147483647, %v579
      %vm1055 = vcmp.eq.f32.partialorder %v1054, 8.507059e+37
      %v1056 = vand.u32 %v579, 2147483648
      %v1057 = vor.u32 1.1754944e-38, %v1056
      %v1058 = vsel %vm1055, %v1057, %v1053
      %v1059 = vmul.f32 1.0, %v1058
      %v1060 = vmul.f32 %v420, %v594
      %v1061 = vmul.f32 %v421, %v609
      %v1062 = vmul.f32 %v422, %v624
      %v1063 = vmul.f32 %v423, %v639
      %v1064 = vmul.f32 %v424, %v654
      %v1065 = vmul.f32 %v425, %v669
      %v1066 = vmul.f32 %v426, %v684
      %v1067 = vmul.f32 %v427, %v699
      %v1068 = vmul.f32 %v428, %v714
      %v1069 = vmul.f32 %v429, %v729
      %v1070 = vmul.f32 %v430, %v744
      %v1071 = vmul.f32 %v431, %v759
      %v1072 = vmul.f32 %v432, %v774
      %v1073 = vmul.f32 %v433, %v789
      %v1074 = vmul.f32 %v434, %v804
      %v1075 = vmul.f32 %v435, %v819
      %v1076 = vmul.f32 %v436, %v834
      %v1077 = vmul.f32 %v437, %v849
      %v1078 = vmul.f32 %v438, %v864
      %v1079 = vmul.f32 %v439, %v879
      %v1080 = vmul.f32 %v440, %v894
      %v1081 = vmul.f32 %v441, %v909
      %v1082 = vmul.f32 %v442, %v924
      %v1083 = vmul.f32 %v443, %v939
      %v1084 = vmul.f32 %v444, %v954
      %v1085 = vmul.f32 %v445, %v969
      %v1086 = vmul.f32 %v446, %v984
      %v1087 = vmul.f32 %v447, %v999
      %v1088 = vmul.f32 %v448, %v1014
      %v1089 = vmul.f32 %v449, %v1029
      %v1090 = vmul.f32 %v450, %v1044
      %v1091 = vmul.f32 %v451, %v1059
      %v1092 = vld [vmem:[%s2] sm:$0xff]
      %v1093 = vld [vmem:[%s2 + $0x8] sm:$0xff]
      %v1094 = vld [vmem:[%s2 + $0x10] sm:$0xff]
      %v1095 = vld [vmem:[%s2 + $0x18] sm:$0xff]
      %v1096 = vld [vmem:[%s2 + $0x20] sm:$0xff]
      %v1097 = vld [vmem:[%s2 + $0x28] sm:$0xff]
      %v1098 = vld [vmem:[%s2 + $0x30] sm:$0xff]
      %v1099 = vld [vmem:[%s2 + $0x38] sm:$0xff]
      %vm1100 = vcmask 523264
      %v1102 = vsel %vm1100, %v1060, 0
      %v1105 = vsel %vm1100, %v1061, 0
      %v1108 = vsel %vm1100, %v1062, 0
      %v1111 = vsel %vm1100, %v1063, 0
      %v1114 = vsel %vm1100, %v1064, 0
      %v1117 = vsel %vm1100, %v1065, 0
      %v1120 = vsel %vm1100, %v1066, 0
      %v1123 = vsel %vm1100, %v1067, 0
      %v1126 = vsel %vm1100, %v1068, 0
      %v1129 = vsel %vm1100, %v1069, 0
      %v1132 = vsel %vm1100, %v1070, 0
      %v1135 = vsel %vm1100, %v1071, 0
      %v1138 = vsel %vm1100, %v1072, 0
      %v1141 = vsel %vm1100, %v1073, 0
      %v1144 = vsel %vm1100, %v1074, 0
      %v1147 = vsel %vm1100, %v1075, 0
      %v1150 = vsel %vm1100, %v1076, 0
      %v1153 = vsel %vm1100, %v1077, 0
      %v1156 = vsel %vm1100, %v1078, 0
      %v1159 = vsel %vm1100, %v1079, 0
      %v1162 = vsel %vm1100, %v1080, 0
      %v1165 = vsel %vm1100, %v1081, 0
      %v1168 = vsel %vm1100, %v1082, 0
      %v1171 = vsel %vm1100, %v1083, 0
      %v1174 = vsel %vm1100, %v1084, 0
      %v1177 = vsel %vm1100, %v1085, 0
      %v1180 = vsel %vm1100, %v1086, 0
      %v1183 = vsel %vm1100, %v1087, 0
      %v1186 = vsel %vm1100, %v1088, 0
      %v1189 = vsel %vm1100, %v1089, 0
      %v1192 = vsel %vm1100, %v1090, 0
      %v1195 = vsel %vm1100, %v1091, 0
      %1197 = vmatpush.msra.mxu0 0.0
      %1198 = vmatpush.msra.mxu0 0.0
      %1199 = vmatpush.msra.mxu0 0.0
      %1200 = vmatpush.msra.mxu0 0.0
      %1201 = vmatpush.msra.mxu0 0.0
      %1202 = vmatpush.msra.mxu0 0.0
      %1203 = vmatpush.msra.mxu0 0.0
      %1204 = vmatpush.msra.mxu0 0.0
      %1205 = vmatpush.msra.mxu0 %v1099
      %1206 = vmatpush.msra.mxu0 %v1098
      %1207 = vmatpush.msra.mxu0 %v1097
      %1208 = vmatpush.msra.mxu0 %v1096
      %1209 = vmatpush.msra.mxu0 %v1095
      %1210 = vmatpush.msra.mxu0 %v1094
      %1211 = vmatpush.msra.mxu0 %v1093
      %1212 = vmatpush.msra.mxu0 %v1092
      %1213 = vmatmul.f32.gmra.mxu0 %v1102
      %v1214 = vpop.f32.mrf.mxu0
      %v1215 = vadd.f32 0.0, %v1214
      %1216 = vmatmul.f32.gmra.mxu0 %v1105
      %v1217 = vpop.f32.mrf.mxu0
      %v1218 = vadd.f32 0.0, %v1217
      %1219 = vmatmul.f32.gmra.mxu0 %v1108
      %v1220 = vpop.f32.mrf.mxu0
      %v1221 = vadd.f32 0.0, %v1220
      %1222 = vmatmul.f32.gmra.mxu0 %v1111
      %v1223 = vpop.f32.mrf.mxu0
      %v1224 = vadd.f32 0.0, %v1223
      %1225 = vmatmul.f32.gmra.mxu0 %v1114
      %v1226 = vpop.f32.mrf.mxu0
      %v1227 = vadd.f32 0.0, %v1226
      %1228 = vmatmul.f32.gmra.mxu0 %v1117
      %v1229 = vpop.f32.mrf.mxu0
      %v1230 = vadd.f32 0.0, %v1229
      %1231 = vmatmul.f32.gmra.mxu0 %v1120
      %v1232 = vpop.f32.mrf.mxu0
      %v1233 = vadd.f32 0.0, %v1232
      %1234 = vmatmul.f32.gmra.mxu0 %v1123
      %v1235 = vpop.f32.mrf.mxu0
      %v1236 = vadd.f32 0.0, %v1235
      %1237 = vmatmul.f32.gmra.mxu0 %v1126
      %v1238 = vpop.f32.mrf.mxu0
      %v1239 = vadd.f32 0.0, %v1238
      %1240 = vmatmul.f32.gmra.mxu0 %v1129
      %v1241 = vpop.f32.mrf.mxu0
      %v1242 = vadd.f32 0.0, %v1241
      %1243 = vmatmul.f32.gmra.mxu0 %v1132
      %v1244 = vpop.f32.mrf.mxu0
      %v1245 = vadd.f32 0.0, %v1244
      %1246 = vmatmul.f32.gmra.mxu0 %v1135
      %v1247 = vpop.f32.mrf.mxu0
      %v1248 = vadd.f32 0.0, %v1247
      %1249 = vmatmul.f32.gmra.mxu0 %v1138
      %v1250 = vpop.f32.mrf.mxu0
      %v1251 = vadd.f32 0.0, %v1250
      %1252 = vmatmul.f32.gmra.mxu0 %v1141
      %v1253 = vpop.f32.mrf.mxu0
      %v1254 = vadd.f32 0.0, %v1253
      %1255 = vmatmul.f32.gmra.mxu0 %v1144
      %v1256 = vpop.f32.mrf.mxu0
      %v1257 = vadd.f32 0.0, %v1256
      %1258 = vmatmul.f32.gmra.mxu0 %v1147
      %v1259 = vpop.f32.mrf.mxu0
      %v1260 = vadd.f32 0.0, %v1259
      %1261 = vmatmul.f32.gmra.mxu0 %v1150
      %v1262 = vpop.f32.mrf.mxu0
      %v1263 = vadd.f32 0.0, %v1262
      %1264 = vmatmul.f32.gmra.mxu0 %v1153
      %v1265 = vpop.f32.mrf.mxu0
      %v1266 = vadd.f32 0.0, %v1265
      %1267 = vmatmul.f32.gmra.mxu0 %v1156
      %v1268 = vpop.f32.mrf.mxu0
      %v1269 = vadd.f32 0.0, %v1268
      %1270 = vmatmul.f32.gmra.mxu0 %v1159
      %v1271 = vpop.f32.mrf.mxu0
      %v1272 = vadd.f32 0.0, %v1271
      %1273 = vmatmul.f32.gmra.mxu0 %v1162
      %v1274 = vpop.f32.mrf.mxu0
      %v1275 = vadd.f32 0.0, %v1274
      %1276 = vmatmul.f32.gmra.mxu0 %v1165
      %v1277 = vpop.f32.mrf.mxu0
      %v1278 = vadd.f32 0.0, %v1277
      %1279 = vmatmul.f32.gmra.mxu0 %v1168
      %v1280 = vpop.f32.mrf.mxu0
      %v1281 = vadd.f32 0.0, %v1280
      %1282 = vmatmul.f32.gmra.mxu0 %v1171
      %v1283 = vpop.f32.mrf.mxu0
      %v1284 = vadd.f32 0.0, %v1283
      %1285 = vmatmul.f32.gmra.mxu0 %v1174
      %v1286 = vpop.f32.mrf.mxu0
      %v1287 = vadd.f32 0.0, %v1286
      %1288 = vmatmul.f32.gmra.mxu0 %v1177
      %v1289 = vpop.f32.mrf.mxu0
      %v1290 = vadd.f32 0.0, %v1289
      %1291 = vmatmul.f32.gmra.mxu0 %v1180
      %v1292 = vpop.f32.mrf.mxu0
      %v1293 = vadd.f32 0.0, %v1292
      %1294 = vmatmul.f32.gmra.mxu0 %v1183
      %v1295 = vpop.f32.mrf.mxu0
      %v1296 = vadd.f32 0.0, %v1295
      %1297 = vmatmul.f32.gmra.mxu0 %v1186
      %v1298 = vpop.f32.mrf.mxu0
      %v1299 = vadd.f32 0.0, %v1298
      %1300 = vmatmul.f32.gmra.mxu0 %v1189
      %v1301 = vpop.f32.mrf.mxu0
      %v1302 = vadd.f32 0.0, %v1301
      %1303 = vmatmul.f32.gmra.mxu0 %v1192
      %v1304 = vpop.f32.mrf.mxu0
      %v1305 = vadd.f32 0.0, %v1304
      %1306 = vmatmul.f32.gmra.mxu0 %v1195
      %v1307 = vpop.f32.mrf.mxu0
      %v1308 = vadd.f32 0.0, %v1307
      %1309 = vdwg.mxu0
      %v1310 = vmul.f32 %v1215, 0.17677669
      %v1311 = vmul.f32 %v1218, 0.17677669
      %v1312 = vmul.f32 %v1221, 0.17677669
      %v1313 = vmul.f32 %v1224, 0.17677669
      %v1314 = vmul.f32 %v1227, 0.17677669
      %v1315 = vmul.f32 %v1230, 0.17677669
      %v1316 = vmul.f32 %v1233, 0.17677669
      %v1317 = vmul.f32 %v1236, 0.17677669
      %v1318 = vmul.f32 %v1239, 0.17677669
      %v1319 = vmul.f32 %v1242, 0.17677669
      %v1320 = vmul.f32 %v1245, 0.17677669
      %v1321 = vmul.f32 %v1248, 0.17677669
      %v1322 = vmul.f32 %v1251, 0.17677669
      %v1323 = vmul.f32 %v1254, 0.17677669
      %v1324 = vmul.f32 %v1257, 0.17677669
      %v1325 = vmul.f32 %v1260, 0.17677669
      %v1326 = vmul.f32 %v1263, 0.17677669
      %v1327 = vmul.f32 %v1266, 0.17677669
      %v1328 = vmul.f32 %v1269, 0.17677669
      %v1329 = vmul.f32 %v1272, 0.17677669
      %v1330 = vmul.f32 %v1275, 0.17677669
      %v1331 = vmul.f32 %v1278, 0.17677669
      %v1332 = vmul.f32 %v1281, 0.17677669
      %v1333 = vmul.f32 %v1284, 0.17677669
      %v1334 = vmul.f32 %v1287, 0.17677669
      %v1335 = vmul.f32 %v1290, 0.17677669
      %v1336 = vmul.f32 %v1293, 0.17677669
      %v1337 = vmul.f32 %v1296, 0.17677669
      %v1338 = vmul.f32 %v1299, 0.17677669
      %v1339 = vmul.f32 %v1302, 0.17677669
      %v1340 = vmul.f32 %v1305, 0.17677669
      %v1341 = vmul.f32 %v1308, 0.17677669
      %vm1342 = vcmask 130048
      %1343 = vst.msk [vmem:[%s172] sm:$0xff] %vm1342, %v1310
      %1344 = vst.msk [vmem:[%s172 + $0x8] sm:$0xff] %vm1342, %v1311
      %1345 = vst.msk [vmem:[%s172 + $0x10] sm:$0xff] %vm1342, %v1312
      %1346 = vst.msk [vmem:[%s172 + $0x18] sm:$0xff] %vm1342, %v1313
      %1347 = vst.msk [vmem:[%s172 + $0x20] sm:$0xff] %vm1342, %v1314
      %1348 = vst.msk [vmem:[%s172 + $0x28] sm:$0xff] %vm1342, %v1315
      %1349 = vst.msk [vmem:[%s172 + $0x30] sm:$0xff] %vm1342, %v1316
      %1350 = vst.msk [vmem:[%s172 + $0x38] sm:$0xff] %vm1342, %v1317
      %1351 = vst.msk [vmem:[%s172 + $0x40] sm:$0xff] %vm1342, %v1318
      %1352 = vst.msk [vmem:[%s172 + $0x48] sm:$0xff] %vm1342, %v1319
      %1353 = vst.msk [vmem:[%s172 + $0x50] sm:$0xff] %vm1342, %v1320
      %1354 = vst.msk [vmem:[%s172 + $0x58] sm:$0xff] %vm1342, %v1321
      %1355 = vst.msk [vmem:[%s172 + $0x60] sm:$0xff] %vm1342, %v1322
      %1356 = vst.msk [vmem:[%s172 + $0x68] sm:$0xff] %vm1342, %v1323
      %1357 = vst.msk [vmem:[%s172 + $0x70] sm:$0xff] %vm1342, %v1324
      %1358 = vst.msk [vmem:[%s172 + $0x78] sm:$0xff] %vm1342, %v1325
      %1359 = vst.msk [vmem:[%s172 + $0x80] sm:$0xff] %vm1342, %v1326
      %1360 = vst.msk [vmem:[%s172 + $0x88] sm:$0xff] %vm1342, %v1327
      %1361 = vst.msk [vmem:[%s172 + $0x90] sm:$0xff] %vm1342, %v1328
      %1362 = vst.msk [vmem:[%s172 + $0x98] sm:$0xff] %vm1342, %v1329
      %1363 = vst.msk [vmem:[%s172 + $0xa0] sm:$0xff] %vm1342, %v1330
      %1364 = vst.msk [vmem:[%s172 + $0xa8] sm:$0xff] %vm1342, %v1331
      %1365 = vst.msk [vmem:[%s172 + $0xb0] sm:$0xff] %vm1342, %v1332
      %1366 = vst.msk [vmem:[%s172 + $0xb8] sm:$0xff] %vm1342, %v1333
      %1367 = vst.msk [vmem:[%s172 + $0xc0] sm:$0xff] %vm1342, %v1334
      %1368 = vst.msk [vmem:[%s172 + $0xc8] sm:$0xff] %vm1342, %v1335
      %1369 = vst.msk [vmem:[%s172 + $0xd0] sm:$0xff] %vm1342, %v1336
      %1370 = vst.msk [vmem:[%s172 + $0xd8] sm:$0xff] %vm1342, %v1337
      %1371 = vst.msk [vmem:[%s172 + $0xe0] sm:$0xff] %vm1342, %v1338
      %1372 = vst.msk [vmem:[%s172 + $0xe8] sm:$0xff] %vm1342, %v1339
      %1373 = vst.msk [vmem:[%s172 + $0xf0] sm:$0xff] %vm1342, %v1340
      %1374 = vst.msk [vmem:[%s172 + $0xf8] sm:$0xff] %vm1342, %v1341
      %s1375 = smul.u32 32, %s14
      %p1376 = scmp.lt.s32.totalorder %s1375, 63
      %s1377 = scalar_select %p1376, %s1375, 63
      %s1378 = smul.addr %s1377, 8
      %s1379 = scalar_lea.vmem %s3, %s1378
      // Predicated region
      $region33: #{tpu_custom_call.1} parent=31 // pred_check
        %p1380 = pneg %p100
      $region34: #{tpu_custom_call.1} parent=31 // pred_check_branch
        %1382 = sbr.rel (%p1380) target = $region36
      $region35: #{tpu_custom_call.1} parent=31 // pred_region
        %s1383 = smul.u32 32, %s14
      $region36: #{tpu_custom_call.1} parent=31 // pred_fallthru
        _
    $region32: #{tpu_custom_call.1} parent=5 // pred_fallthru
      _
    %p1384 = scmp.le.s32.totalorder 2, %s9
    // Predicated region
    $region37: #{tpu_custom_call.1} parent=5 // pred_check
      %p1385 = pneg %p1384
    $region38: #{tpu_custom_call.1} parent=5 // pred_check_branch
      %1387 = sbr.rel (%p1385) target = $region40
    $region39: #{tpu_custom_call.1} parent=5 // pred_region
      %s1388 = ssub.s32 %s9, 2
      // Predicated region
      $region41: #{tpu_custom_call.1} parent=39 // pred_check
        %p1389 = pneg %p106
      $region42: #{tpu_custom_call.1} parent=39 // pred_check_branch
        %1391 = sbr.rel (%p1389) target = $region44
      $region43: #{tpu_custom_call.1} parent=39 // pred_region
        %s1392 = smul.u32 32, %s15
        %p1393 = scmp.lt.s32.totalorder %s1392, 63
        %s1394 = scalar_select %p1393, %s1392, 63
        %s1395 = smul.addr %s1394, 8
        %s1396 = scalar_lea.vmem %s3, %s1395
      $region44: #{tpu_custom_call.1} parent=39 // pred_fallthru
        _
    $region40: #{tpu_custom_call.1} parent=5 // pred_fallthru
      _
  $region6: #{tpu_custom_call.1} parent=0 // loop_footer
    %s13 = sadd.s32 1, %s9
  $region7: #{tpu_custom_call.1} parent=0 // loop_footer_branch
    %8 = sbr.rel target = $region3
  $region8: #{tpu_custom_call.1} parent=0 // loop_exit
    _

</llo_original>
